<compile_context>
chip_gen: v5e
topology: v5e:2x2
jax: 0.10.0
libtpu: 0.0.40
codegen_flags: <defaults>
</compile_context>

<pallas_src>
import functools

import jax
import jax.numpy as jnp
from jax.experimental import pallas as pl
from jax.experimental.pallas import tpu as pltpu


def _round_up(n, m):
    return ((n + m - 1) // m) * m


def _pinn_kernel(x_ref,
                 w0_ref, b0_ref,
                 w1_ref, b1_ref,
                 w2_ref, b2_ref,
                 w3_ref, b3_ref,
                 w4_ref, b4_ref,
                 o_ref):
    """Fused 5-layer MLP forward (f32) for one batch tile.

    All weights/biases are VMEM-resident full blocks (constant index maps);
    only the batch dimension is tiled by the grid.
    """
    # Layer 0: Linear(d_in, hidden) + ReLU
    h = jnp.dot(x_ref[...], w0_ref[...],
                preferred_element_type=jnp.float32) + b0_ref[...]
    h = jnp.maximum(h, 0.0)

    # Hidden layers 1..3: Linear(hidden, hidden) + ReLU (statically unrolled)
    for w_ref, b_ref in ((w1_ref, b1_ref), (w2_ref, b2_ref), (w3_ref, b3_ref)):
        h = jnp.dot(h, w_ref[...],
                    preferred_element_type=jnp.float32) + b_ref[...]
        h = jnp.maximum(h, 0.0)

    # Output layer: Linear(hidden, d_out), no activation.
    out = jnp.dot(h, w4_ref[...],
                  preferred_element_type=jnp.float32) + b4_ref[...]
    o_ref[...] = out.astype(o_ref.dtype)


def _choose_block_b(B, block_b=None, max_block_b=2048):
    """Pick the batch tile.  Big tiles amortize the ~0.35us/step overhead and
    the per-tile weight reloads; for batches large enough to split we keep an
    even step count >= 2 so the 'parallel' axis feeds both v7x TensorCores."""
    B8 = _round_up(max(B, 1), 8)
    if block_b is None:
        if B8 <= 256:
            block_b = B8                       # one step; too small to split
        else:
            n_steps = max(2, pl.cdiv(B8, max_block_b))
            if n_steps % 2:
                n_steps += 1                   # even -> megacore-friendly
            block_b = _round_up(pl.cdiv(B8, n_steps), 8)
    assert block_b % 8 == 0, "block_b must be a multiple of 8 (sublane tiling)"
    B_p = _round_up(B8, block_b)
    return block_b, B_p


@functools.partial(jax.jit, static_argnames=("block_b",))
def pinn_forward(x, params, *, block_b=None):
    """Fused PINN forward. x: [B, input_size] -> [B, output_size] float32.

    `params` must come from `prepare_params` (kernel layout, f32) so that no
    per-call casting/padding fusions run inside the jitted graph."""
    (w0, b0), (w1, b1), (w2, b2), (w3, b3), (w4, b4) = params
    x = x.astype(jnp.float32)
    B, d_in = x.shape
    hidden = w0.shape[1]
    d_out = w4.shape[1]

    block_b, B_p = _choose_block_b(B, block_b)
    if B_p != B:  # only the batch dim is ever padded (sliced off afterwards)
        x = jnp.zeros((B_p, d_in), x.dtype).at[:B].set(x)

    grid = (B_p // block_b,)
    full = lambda i: (0, 0)  # parameters: whole array is one resident block

    in_specs = [
        pl.BlockSpec((block_b, d_in), lambda i: (i, 0)),
        pl.BlockSpec((d_in, hidden), full), pl.BlockSpec((1, hidden), full),
        pl.BlockSpec((hidden, hidden), full), pl.BlockSpec((1, hidden), full),
        pl.BlockSpec((hidden, hidden), full), pl.BlockSpec((1, hidden), full),
        pl.BlockSpec((hidden, hidden), full), pl.BlockSpec((1, hidden), full),
        pl.BlockSpec((hidden, d_out), full), pl.BlockSpec((1, d_out), full),
    ]
    out_spec = pl.BlockSpec((block_b, d_out), lambda i: (i, 0))

    flops = 2 * B_p * (d_in * hidden + 3 * hidden * hidden + hidden * d_out)
    param_bytes = sum(int(a.size) * a.dtype.itemsize
                      for a in (w0, b0, w1, b1, w2, b2, w3, b3, w4, b4))
    bytes_accessed = (int(x.size) * x.dtype.itemsize
                      + B_p * d_out * 4 + param_bytes)

    out = pl.pallas_call(
        _pinn_kernel,
        out_shape=jax.ShapeDtypeStruct((B_p, d_out), jnp.float32),
        grid_spec=pl.GridSpec(grid=grid, in_specs=in_specs, out_specs=out_spec),
        compiler_params=pltpu.CompilerParams(
            dimension_semantics=("parallel",)),
        cost_estimate=pl.CostEstimate(flops=flops, transcendentals=0,
                                      bytes_accessed=bytes_accessed),
    )(x, w0, b0, w1, b1, w2, b2, w3, b3, w4, b4)

    return out[:B] if B_p != B else out


def prepare_params(torch_layout_params):
    """ONE-TIME conversion from nn.Linear layout (weight [out,in], bias [out])
    to the kernel layout (W [in,out] f32, b [1,out] f32).  Call this once and
    reuse the result; it keeps all cast/transpose work out of the hot path."""
    prepared = []
    for w, b in torch_layout_params:
        prepared.append((jnp.asarray(w, jnp.float32).T,
                         jnp.asarray(b, jnp.float32).reshape(1, -1)))
    return tuple(prepared)


def init_pinn_params(key, input_size, output_size, hidden_layers=3,
                     hidden_units=128):
    """Deterministic init mimicking nn.Linear: U(-1/sqrt(fan_in), 1/sqrt(fan_in)).
    Returns torch layout: weight [out, in], bias [out]."""
    dims = [input_size] + [hidden_units] * (hidden_layers + 1) + [output_size]
    params = []
    for i in range(len(dims) - 1):
        fan_in, fan_out = dims[i], dims[i + 1]
        key, kw, kb = jax.random.split(key, 3)
        bound = 1.0 / (fan_in ** 0.5)
        w = jax.random.uniform(kw, (fan_out, fan_in), jnp.float32, -bound, bound)
        b = jax.random.uniform(kb, (fan_out,), jnp.float32, -bound, bound)
        params.append((w, b))
    return params


def pinn_reference(x, prepared_params):
    """Pure-JAX f32 reference (PyTorch semantics) on prepared params."""
    h = x.astype(jnp.float32)
    n = len(prepared_params)
    for i, (w, b) in enumerate(prepared_params):
        h = jnp.dot(h, w, preferred_element_type=jnp.float32) + b
        if i < n - 1:
            h = jnp.maximum(h, 0.0)
    return h


if __name__ == "__main__":
    # PINN(input_size=4, output_size=2), hidden_layers=3, hidden_units=128.
    # batch=512 -> auto tile of 256 rows, 2 parallel grid steps (both v7x TCs).
    input_size, output_size, hidden_units, hidden_layers = 4, 2, 128, 3
    batch = 512

    key = jax.random.PRNGKey(0)
    key, kx = jax.random.split(key)
    x = jax.random.normal(kx, (batch, input_size), dtype=jnp.float32)

    torch_params = init_pinn_params(key, input_size, output_size,
                                    hidden_layers=hidden_layers,
                                    hidden_units=hidden_units)
    params = prepare_params(torch_params)   # one-time, outside the jitted path

    out = jax.block_until_ready(pinn_forward(x, params))
    assert out.shape == (batch, output_size)

    # f32 reference (PyTorch semantics); loose tolerance covers MXU f32 passes.
    ref = pinn_reference(x, params)
    assert jnp.allclose(out, ref, atol=1e-2, rtol=1e-2), "mismatch vs f32 ref"

    # Ragged batch (not a multiple of 8 / the tile) handled via batch padding.
    x_small = x[:10]
    out_small = jax.block_until_ready(pinn_forward(x_small, params))
    assert out_small.shape == (10, output_size)
    assert jnp.allclose(out_small, out[:10], atol=1e-4, rtol=1e-4)

    print("KERNEL_OK")
</pallas_src>

<mosaic_0001>
module attributes {stable_mosaic.version = 11 : i64} {
  func.func @_pinn_kernel(%arg0: i32, %arg1: memref<256x4xf32, #tpu.memory_space<vmem>>, %arg2: memref<4x128xf32, #tpu.memory_space<vmem>>, %arg3: memref<1x128xf32, #tpu.memory_space<vmem>>, %arg4: memref<128x128xf32, #tpu.memory_space<vmem>>, %arg5: memref<1x128xf32, #tpu.memory_space<vmem>>, %arg6: memref<128x128xf32, #tpu.memory_space<vmem>>, %arg7: memref<1x128xf32, #tpu.memory_space<vmem>>, %arg8: memref<128x128xf32, #tpu.memory_space<vmem>>, %arg9: memref<1x128xf32, #tpu.memory_space<vmem>>, %arg10: memref<128x2xf32, #tpu.memory_space<vmem>>, %arg11: memref<1x2xf32, #tpu.memory_space<vmem>>, %arg12: memref<256x2xf32, #tpu.memory_space<vmem>>) attributes {dimension_semantics = [#tpu.dimension_semantics<parallel>], iteration_bounds = array<i64: 2>, scalar_prefetch = 0 : i64, scratch_operands = 0 : i64, tpu.core_type = #tpu.core_type<tc>, window_params = [{transform_indices = @transform_0, window_bounds = array<i64: 256, 4>}, {pipeline_mode = #tpu.pipeline_mode<synchronous>, transform_indices = @transform_1, window_bounds = array<i64: 4, 128>}, {pipeline_mode = #tpu.pipeline_mode<synchronous>, transform_indices = @transform_2, window_bounds = array<i64: 1, 128>}, {pipeline_mode = #tpu.pipeline_mode<synchronous>, transform_indices = @transform_3, window_bounds = array<i64: 128, 128>}, {pipeline_mode = #tpu.pipeline_mode<synchronous>, transform_indices = @transform_4, window_bounds = array<i64: 1, 128>}, {pipeline_mode = #tpu.pipeline_mode<synchronous>, transform_indices = @transform_5, window_bounds = array<i64: 128, 128>}, {pipeline_mode = #tpu.pipeline_mode<synchronous>, transform_indices = @transform_6, window_bounds = array<i64: 1, 128>}, {pipeline_mode = #tpu.pipeline_mode<synchronous>, transform_indices = @transform_7, window_bounds = array<i64: 128, 128>}, {pipeline_mode = #tpu.pipeline_mode<synchronous>, transform_indices = @transform_8, window_bounds = array<i64: 1, 128>}, {pipeline_mode = #tpu.pipeline_mode<synchronous>, transform_indices = @transform_9, window_bounds = array<i64: 128, 2>}, {pipeline_mode = #tpu.pipeline_mode<synchronous>, transform_indices = @transform_10, window_bounds = array<i64: 1, 2>}, {transform_indices = @transform_11, window_bounds = array<i64: 256, 2>}]} {
    %c0 = arith.constant 0 : index
    %c0_0 = arith.constant 0 : index
    %0 = vector.load %arg1[%c0, %c0_0] : memref<256x4xf32, #tpu.memory_space<vmem>>, vector<256x4xf32>
    %c0_1 = arith.constant 0 : index
    %c0_2 = arith.constant 0 : index
    %1 = vector.load %arg2[%c0_1, %c0_2] : memref<4x128xf32, #tpu.memory_space<vmem>>, vector<4x128xf32>
    %cst = arith.constant dense<0.000000e+00> : vector<256x128xf32>
    %2 = tpu.matmul %0, %1, %cst {dimension_numbers = #tpu.dot_dimension_numbers<[1], [0], [0], [1], [0, 0, 1, 1], [], []>} : vector<256x4xf32>, vector<4x128xf32>, vector<256x128xf32> -> vector<256x128xf32>
    %c0_3 = arith.constant 0 : index
    %c0_4 = arith.constant 0 : index
    %3 = vector.load %arg3[%c0_3, %c0_4] : memref<1x128xf32, #tpu.memory_space<vmem>>, vector<1x128xf32>
    %4 = vector.broadcast %3 : vector<1x128xf32> to vector<256x128xf32>
    %5 = arith.addf %2, %4 : vector<256x128xf32>
    %cst_5 = arith.constant 0.000000e+00 : f32
    %6 = vector.broadcast %cst_5 : f32 to vector<256x128xf32>
    %7 = arith.maximumf %5, %6 : vector<256x128xf32>
    %c0_6 = arith.constant 0 : index
    %c0_7 = arith.constant 0 : index
    %8 = vector.load %arg4[%c0_6, %c0_7] : memref<128x128xf32, #tpu.memory_space<vmem>>, vector<128x128xf32>
    %cst_8 = arith.constant dense<0.000000e+00> : vector<256x128xf32>
    %9 = tpu.matmul %7, %8, %cst_8 {dimension_numbers = #tpu.dot_dimension_numbers<[1], [0], [0], [1], [0, 0, 1, 1], [], []>} : vector<256x128xf32>, vector<128x128xf32>, vector<256x128xf32> -> vector<256x128xf32>
    %c0_9 = arith.constant 0 : index
    %c0_10 = arith.constant 0 : index
    %10 = vector.load %arg5[%c0_9, %c0_10] : memref<1x128xf32, #tpu.memory_space<vmem>>, vector<1x128xf32>
    %11 = vector.broadcast %10 : vector<1x128xf32> to vector<256x128xf32>
    %12 = arith.addf %9, %11 : vector<256x128xf32>
    %cst_11 = arith.constant 0.000000e+00 : f32
    %13 = vector.broadcast %cst_11 : f32 to vector<256x128xf32>
    %14 = arith.maximumf %12, %13 : vector<256x128xf32>
    %c0_12 = arith.constant 0 : index
    %c0_13 = arith.constant 0 : index
    %15 = vector.load %arg6[%c0_12, %c0_13] : memref<128x128xf32, #tpu.memory_space<vmem>>, vector<128x128xf32>
    %cst_14 = arith.constant dense<0.000000e+00> : vector<256x128xf32>
    %16 = tpu.matmul %14, %15, %cst_14 {dimension_numbers = #tpu.dot_dimension_numbers<[1], [0], [0], [1], [0, 0, 1, 1], [], []>} : vector<256x128xf32>, vector<128x128xf32>, vector<256x128xf32> -> vector<256x128xf32>
    %c0_15 = arith.constant 0 : index
    %c0_16 = arith.constant 0 : index
    %17 = vector.load %arg7[%c0_15, %c0_16] : memref<1x128xf32, #tpu.memory_space<vmem>>, vector<1x128xf32>
    %18 = vector.broadcast %17 : vector<1x128xf32> to vector<256x128xf32>
    %19 = arith.addf %16, %18 : vector<256x128xf32>
    %cst_17 = arith.constant 0.000000e+00 : f32
    %20 = vector.broadcast %cst_17 : f32 to vector<256x128xf32>
    %21 = arith.maximumf %19, %20 : vector<256x128xf32>
    %c0_18 = arith.constant 0 : index
    %c0_19 = arith.constant 0 : index
    %22 = vector.load %arg8[%c0_18, %c0_19] : memref<128x128xf32, #tpu.memory_space<vmem>>, vector<128x128xf32>
    %cst_20 = arith.constant dense<0.000000e+00> : vector<256x128xf32>
    %23 = tpu.matmul %21, %22, %cst_20 {dimension_numbers = #tpu.dot_dimension_numbers<[1], [0], [0], [1], [0, 0, 1, 1], [], []>} : vector<256x128xf32>, vector<128x128xf32>, vector<256x128xf32> -> vector<256x128xf32>
    %c0_21 = arith.constant 0 : index
    %c0_22 = arith.constant 0 : index
    %24 = vector.load %arg9[%c0_21, %c0_22] : memref<1x128xf32, #tpu.memory_space<vmem>>, vector<1x128xf32>
    %25 = vector.broadcast %24 : vector<1x128xf32> to vector<256x128xf32>
    %26 = arith.addf %23, %25 : vector<256x128xf32>
    %cst_23 = arith.constant 0.000000e+00 : f32
    %27 = vector.broadcast %cst_23 : f32 to vector<256x128xf32>
    %28 = arith.maximumf %26, %27 : vector<256x128xf32>
    %c0_24 = arith.constant 0 : index
    %c0_25 = arith.constant 0 : index
    %29 = vector.load %arg10[%c0_24, %c0_25] : memref<128x2xf32, #tpu.memory_space<vmem>>, vector<128x2xf32>
    %cst_26 = arith.constant dense<0.000000e+00> : vector<256x2xf32>
    %30 = tpu.matmul %28, %29, %cst_26 {dimension_numbers = #tpu.dot_dimension_numbers<[1], [0], [0], [1], [0, 0, 1, 1], [], []>} : vector<256x128xf32>, vector<128x2xf32>, vector<256x2xf32> -> vector<256x2xf32>
    %c0_27 = arith.constant 0 : index
    %c0_28 = arith.constant 0 : index
    %31 = vector.load %arg11[%c0_27, %c0_28] : memref<1x2xf32, #tpu.memory_space<vmem>>, vector<1x2xf32>
    %32 = vector.broadcast %31 : vector<1x2xf32> to vector<256x2xf32>
    %33 = arith.addf %30, %32 : vector<256x2xf32>
    %c0_29 = arith.constant 0 : index
    %c0_30 = arith.constant 0 : index
    %34 = vector.load %arg12[%c0_29, %c0_30] : memref<256x2xf32, #tpu.memory_space<vmem>>, vector<256x2xf32>
    tpu.vector_store %arg12[%c0_29, %c0_30], %33 {strides = array<i32>} : memref<256x2xf32, #tpu.memory_space<vmem>>, vector<256x2xf32>,
    return
  }
  func.func @transform_0(%arg0: i32) -> (i32, i32) {
    %c0_i32 = arith.constant 0 : i32
    %c0_i32_0 = arith.constant 0 : i32
    return %arg0, %c0_i32 : i32, i32
  }
  func.func @transform_1(%arg0: i32) -> (i32, i32) {
    %c0_i32 = arith.constant 0 : i32
    %c0_i32_0 = arith.constant 0 : i32
    %c0_i32_1 = arith.constant 0 : i32
    return %c0_i32, %c0_i32_0 : i32, i32
  }
  func.func @transform_2(%arg0: i32) -> (i32, i32) {
    %c0_i32 = arith.constant 0 : i32
    %c0_i32_0 = arith.constant 0 : i32
    %c0_i32_1 = arith.constant 0 : i32
    return %c0_i32, %c0_i32_0 : i32, i32
  }
  func.func @transform_3(%arg0: i32) -> (i32, i32) {
    %c0_i32 = arith.constant 0 : i32
    %c0_i32_0 = arith.constant 0 : i32
    %c0_i32_1 = arith.constant 0 : i32
    return %c0_i32, %c0_i32_0 : i32, i32
  }
  func.func @transform_4(%arg0: i32) -> (i32, i32) {
    %c0_i32 = arith.constant 0 : i32
    %c0_i32_0 = arith.constant 0 : i32
    %c0_i32_1 = arith.constant 0 : i32
    return %c0_i32, %c0_i32_0 : i32, i32
  }
  func.func @transform_5(%arg0: i32) -> (i32, i32) {
    %c0_i32 = arith.constant 0 : i32
    %c0_i32_0 = arith.constant 0 : i32
    %c0_i32_1 = arith.constant 0 : i32
    return %c0_i32, %c0_i32_0 : i32, i32
  }
  func.func @transform_6(%arg0: i32) -> (i32, i32) {
    %c0_i32 = arith.constant 0 : i32
    %c0_i32_0 = arith.constant 0 : i32
    %c0_i32_1 = arith.constant 0 : i32
    return %c0_i32, %c0_i32_0 : i32, i32
  }
  func.func @transform_7(%arg0: i32) -> (i32, i32) {
    %c0_i32 = arith.constant 0 : i32
    %c0_i32_0 = arith.constant 0 : i32
    %c0_i32_1 = arith.constant 0 : i32
    return %c0_i32, %c0_i32_0 : i32, i32
  }
  func.func @transform_8(%arg0: i32) -> (i32, i32) {
    %c0_i32 = arith.constant 0 : i32
    %c0_i32_0 = arith.constant 0 : i32
    %c0_i32_1 = arith.constant 0 : i32
    return %c0_i32, %c0_i32_0 : i32, i32
  }
  func.func @transform_9(%arg0: i32) -> (i32, i32) {
    %c0_i32 = arith.constant 0 : i32
    %c0_i32_0 = arith.constant 0 : i32
    %c0_i32_1 = arith.constant 0 : i32
    return %c0_i32, %c0_i32_0 : i32, i32
  }
  func.func @transform_10(%arg0: i32) -> (i32, i32) {
    %c0_i32 = arith.constant 0 : i32
    %c0_i32_0 = arith.constant 0 : i32
    %c0_i32_1 = arith.constant 0 : i32
    return %c0_i32, %c0_i32_0 : i32, i32
  }
  func.func @transform_11(%arg0: i32) -> (i32, i32) {
    %c0_i32 = arith.constant 0 : i32
    %c0_i32_0 = arith.constant 0 : i32
    return %arg0, %c0_i32 : i32, i32
  }
}

</mosaic_0001>

<llo_original>
// kernel: pinn_forward.1
$region0: #{pinn_forward.1}
  #allocation0 [shape = 'u32[]', space=smem, size = 0x4, offset = 0x4, fixed_abs, tag = 'smem constant byte address 0x4 - core index']
  #allocation1 [shape = 'u32[72,128]{1,0:T(1,128)}', space=vmem, size = 0x9000, scoped, tag = 'internal scratch']
  %s0 = inlined_call_operand.vmem [shape: f32[512,4], index: 0, kind: input, shape index: {}]
  %s1 = inlined_call_operand.vmem [shape: f32[4,128], index: 1, kind: input, shape index: {}]
  %s2 = inlined_call_operand.vmem [shape: f32[1,128], index: 2, kind: input, shape index: {}]
  %s3 = inlined_call_operand.vmem [shape: f32[128,128], index: 3, kind: input, shape index: {}]
  %s4 = inlined_call_operand.vmem [shape: f32[1,128], index: 4, kind: input, shape index: {}]
  %s5 = inlined_call_operand.vmem [shape: f32[128,128], index: 5, kind: input, shape index: {}]
  %s6 = inlined_call_operand.vmem [shape: f32[1,128], index: 6, kind: input, shape index: {}]
  %s7 = inlined_call_operand.vmem [shape: f32[128,128], index: 7, kind: input, shape index: {}]
  %s8 = inlined_call_operand.vmem [shape: f32[1,128], index: 8, kind: input, shape index: {}]
  %s9 = inlined_call_operand.vmem [shape: f32[128,2], index: 9, kind: input, shape index: {}]
  %s10 = inlined_call_operand.vmem [shape: f32[1,2], index: 10, kind: input, shape index: {}]
  %s11 = inlined_call_operand.vmem [shape: f32[512,2], index: 11, kind: output, shape index: {}]
  %s12 = sld [smem:[#allocation0]]
  $region77: #{pinn_forward.1} parent=0
    _
  %s14 = ssub.s32 1, %s12
  %s15 = scalar_select 0, %s14, %s12
  loop: start=0, step=1, limit=4
  $region2: #{pinn_forward.1} parent=0 // loop_pre_header
    _
  $region3: #{pinn_forward.1} parent=0 // loop_header
    %s17 = sphi 0, %s21
    %p18 = scmp.ge.s32.totalorder %s17, 4
    %s27 = sphi 0, %s29
    %s30 = sphi 0, %s27
    %s31 = sphi 0, %s30
    %s47 = sphi 0, %s31
    %s51 = sphi 0, %s51
    %s53 = sphi 0, %s51
    %s54 = sphi 0, %s53
    %s68 = sphi 0, %s54
    %s72 = sphi 0, %s72
    %s74 = sphi 0, %s72
    %s75 = sphi 0, %s74
    %s89 = sphi 0, %s75
    %s93 = sphi 0, %s93
    %s95 = sphi 0, %s93
    %s96 = sphi 0, %s95
    %s110 = sphi 0, %s96
    %s114 = sphi 0, %s114
    %s116 = sphi 0, %s114
    %s117 = sphi 0, %s116
    %s131 = sphi 0, %s117
    %s135 = sphi 0, %s135
    %s137 = sphi 0, %s135
    %s138 = sphi 0, %s137
    %s152 = sphi 0, %s138
    %s156 = sphi 0, %s156
    %s158 = sphi 0, %s156
    %s159 = sphi 0, %s158
    %s173 = sphi 0, %s159
    %s177 = sphi 0, %s177
    %s179 = sphi 0, %s177
    %s180 = sphi 0, %s179
    %s194 = sphi 0, %s180
    %s198 = sphi 0, %s198
    %s200 = sphi 0, %s198
    %s201 = sphi 0, %s200
    %s215 = sphi 0, %s201
    %s219 = sphi 0, %s219
    %s221 = sphi 0, %s219
    %s222 = sphi 0, %s221
    %s236 = sphi 0, %s222
    %s240 = sphi 0, %s240
    %s242 = sphi 0, %s240
    %s243 = sphi 0, %s242
    %s257 = sphi 0, %s243
    %s263 = sphi 0, %s265
    %s266 = sphi 0, %s263
    %s267 = sphi 0, %s266
    %s283 = sphi 0, %s267
  $region4: #{pinn_forward.1} parent=0 // loop_header_branch
    %20 = sbr.rel (%p18) target = $region8
  $region5: #{pinn_forward.1} parent=0 // loop_body
    %s22 = ssub.s32 %s17, 1
    %s23 = ssub.s32 %s17, 2
    %s24 = sadd.s32 %s17, 1
    %s25 = ssub.s32 %s17, %s24
    %p26 = scmp.eq.s32.totalorder %s25, 0
    %s28 = sadd.s32 %s27, 1
    %s29 = scalar_select %p26, %s27, %s28
    %p32 = pneg %p26
    %p33 = scmp.eq.s32.totalorder %s17, 1
    %p34 = por %p32, %p33
    %p35 = scmp.ne.s32.totalorder %s27, %s30
    %p36 = scmp.eq.s32.totalorder %s17, 0
    %p37 = por %p35, %p36
    %p38 = scmp.ne.s32.totalorder %s27, %s30
    %p39 = scmp.eq.s32.totalorder %s22, 1
    %p40 = por %p38, %p39
    %p41 = scmp.ne.s32.totalorder %s30, %s31
    %p42 = scmp.eq.s32.totalorder %s22, 0
    %p43 = por %p41, %p42
    %p44 = scmp.ne.s32.totalorder %s30, %s31
    %p45 = scmp.eq.s32.totalorder %s23, 1
    %p46 = por %p44, %p45
    %p48 = scmp.ne.s32.totalorder %s31, %s47
    %p49 = scmp.eq.s32.totalorder %s23, 0
    %p50 = por %p48, %p49
    %s52 = sadd.s32 %s51, 1
    %p55 = scmp.eq.s32.totalorder %s17, 1
    %p56 = scmp.ne.s32.totalorder %s51, %s53
    %p57 = scmp.eq.s32.totalorder %s17, 0
    %p58 = por %p56, %p57
    %p59 = scmp.ne.s32.totalorder %s51, %s53
    %p60 = scmp.eq.s32.totalorder %s22, 1
    %p61 = por %p59, %p60
    %p62 = scmp.ne.s32.totalorder %s53, %s54
    %p63 = scmp.eq.s32.totalorder %s22, 0
    %p64 = por %p62, %p63
    %p65 = scmp.ne.s32.totalorder %s53, %s54
    %p66 = scmp.eq.s32.totalorder %s23, 1
    %p67 = por %p65, %p66
    %p69 = scmp.ne.s32.totalorder %s54, %s68
    %p70 = scmp.eq.s32.totalorder %s23, 0
    %p71 = por %p69, %p70
    %s73 = sadd.s32 %s72, 1
    %p76 = scmp.eq.s32.totalorder %s17, 1
    %p77 = scmp.ne.s32.totalorder %s72, %s74
    %p78 = scmp.eq.s32.totalorder %s17, 0
    %p79 = por %p77, %p78
    %p80 = scmp.ne.s32.totalorder %s72, %s74
    %p81 = scmp.eq.s32.totalorder %s22, 1
    %p82 = por %p80, %p81
    %p83 = scmp.ne.s32.totalorder %s74, %s75
    %p84 = scmp.eq.s32.totalorder %s22, 0
    %p85 = por %p83, %p84
    %p86 = scmp.ne.s32.totalorder %s74, %s75
    %p87 = scmp.eq.s32.totalorder %s23, 1
    %p88 = por %p86, %p87
    %p90 = scmp.ne.s32.totalorder %s75, %s89
    %p91 = scmp.eq.s32.totalorder %s23, 0
    %p92 = por %p90, %p91
    %s94 = sadd.s32 %s93, 1
    %p97 = scmp.eq.s32.totalorder %s17, 1
    %p98 = scmp.ne.s32.totalorder %s93, %s95
    %p99 = scmp.eq.s32.totalorder %s17, 0
    %p100 = por %p98, %p99
    %p101 = scmp.ne.s32.totalorder %s93, %s95
    %p102 = scmp.eq.s32.totalorder %s22, 1
    %p103 = por %p101, %p102
    %p104 = scmp.ne.s32.totalorder %s95, %s96
    %p105 = scmp.eq.s32.totalorder %s22, 0
    %p106 = por %p104, %p105
    %p107 = scmp.ne.s32.totalorder %s95, %s96
    %p108 = scmp.eq.s32.totalorder %s23, 1
    %p109 = por %p107, %p108
    %p111 = scmp.ne.s32.totalorder %s96, %s110
    %p112 = scmp.eq.s32.totalorder %s23, 0
    %p113 = por %p111, %p112
    %s115 = sadd.s32 %s114, 1
    %p118 = scmp.eq.s32.totalorder %s17, 1
    %p119 = scmp.ne.s32.totalorder %s114, %s116
    %p120 = scmp.eq.s32.totalorder %s17, 0
    %p121 = por %p119, %p120
    %p122 = scmp.ne.s32.totalorder %s114, %s116
    %p123 = scmp.eq.s32.totalorder %s22, 1
    %p124 = por %p122, %p123
    %p125 = scmp.ne.s32.totalorder %s116, %s117
    %p126 = scmp.eq.s32.totalorder %s22, 0
    %p127 = por %p125, %p126
    %p128 = scmp.ne.s32.totalorder %s116, %s117
    %p129 = scmp.eq.s32.totalorder %s23, 1
    %p130 = por %p128, %p129
    %p132 = scmp.ne.s32.totalorder %s117, %s131
    %p133 = scmp.eq.s32.totalorder %s23, 0
    %p134 = por %p132, %p133
    %s136 = sadd.s32 %s135, 1
    %p139 = scmp.eq.s32.totalorder %s17, 1
    %p140 = scmp.ne.s32.totalorder %s135, %s137
    %p141 = scmp.eq.s32.totalorder %s17, 0
    %p142 = por %p140, %p141
    %p143 = scmp.ne.s32.totalorder %s135, %s137
    %p144 = scmp.eq.s32.totalorder %s22, 1
    %p145 = por %p143, %p144
    %p146 = scmp.ne.s32.totalorder %s137, %s138
    %p147 = scmp.eq.s32.totalorder %s22, 0
    %p148 = por %p146, %p147
    %p149 = scmp.ne.s32.totalorder %s137, %s138
    %p150 = scmp.eq.s32.totalorder %s23, 1
    %p151 = por %p149, %p150
    %p153 = scmp.ne.s32.totalorder %s138, %s152
    %p154 = scmp.eq.s32.totalorder %s23, 0
    %p155 = por %p153, %p154
    %s157 = sadd.s32 %s156, 1
    %p160 = scmp.eq.s32.totalorder %s17, 1
    %p161 = scmp.ne.s32.totalorder %s156, %s158
    %p162 = scmp.eq.s32.totalorder %s17, 0
    %p163 = por %p161, %p162
    %p164 = scmp.ne.s32.totalorder %s156, %s158
    %p165 = scmp.eq.s32.totalorder %s22, 1
    %p166 = por %p164, %p165
    %p167 = scmp.ne.s32.totalorder %s158, %s159
    %p168 = scmp.eq.s32.totalorder %s22, 0
    %p169 = por %p167, %p168
    %p170 = scmp.ne.s32.totalorder %s158, %s159
    %p171 = scmp.eq.s32.totalorder %s23, 1
    %p172 = por %p170, %p171
    %p174 = scmp.ne.s32.totalorder %s159, %s173
    %p175 = scmp.eq.s32.totalorder %s23, 0
    %p176 = por %p174, %p175
    %s178 = sadd.s32 %s177, 1
    %p181 = scmp.eq.s32.totalorder %s17, 1
    %p182 = scmp.ne.s32.totalorder %s177, %s179
    %p183 = scmp.eq.s32.totalorder %s17, 0
    %p184 = por %p182, %p183
    %p185 = scmp.ne.s32.totalorder %s177, %s179
    %p186 = scmp.eq.s32.totalorder %s22, 1
    %p187 = por %p185, %p186
    %p188 = scmp.ne.s32.totalorder %s179, %s180
    %p189 = scmp.eq.s32.totalorder %s22, 0
    %p190 = por %p188, %p189
    %p191 = scmp.ne.s32.totalorder %s179, %s180
    %p192 = scmp.eq.s32.totalorder %s23, 1
    %p193 = por %p191, %p192
    %p195 = scmp.ne.s32.totalorder %s180, %s194
    %p196 = scmp.eq.s32.totalorder %s23, 0
    %p197 = por %p195, %p196
    %s199 = sadd.s32 %s198, 1
    %p202 = scmp.eq.s32.totalorder %s17, 1
    %p203 = scmp.ne.s32.totalorder %s198, %s200
    %p204 = scmp.eq.s32.totalorder %s17, 0
    %p205 = por %p203, %p204
    %p206 = scmp.ne.s32.totalorder %s198, %s200
    %p207 = scmp.eq.s32.totalorder %s22, 1
    %p208 = por %p206, %p207
    %p209 = scmp.ne.s32.totalorder %s200, %s201
    %p210 = scmp.eq.s32.totalorder %s22, 0
    %p211 = por %p209, %p210
    %p212 = scmp.ne.s32.totalorder %s200, %s201
    %p213 = scmp.eq.s32.totalorder %s23, 1
    %p214 = por %p212, %p213
    %p216 = scmp.ne.s32.totalorder %s201, %s215
    %p217 = scmp.eq.s32.totalorder %s23, 0
    %p218 = por %p216, %p217
    %s220 = sadd.s32 %s219, 1
    %p223 = scmp.eq.s32.totalorder %s17, 1
    %p224 = scmp.ne.s32.totalorder %s219, %s221
    %p225 = scmp.eq.s32.totalorder %s17, 0
    %p226 = por %p224, %p225
    %p227 = scmp.ne.s32.totalorder %s219, %s221
    %p228 = scmp.eq.s32.totalorder %s22, 1
    %p229 = por %p227, %p228
    %p230 = scmp.ne.s32.totalorder %s221, %s222
    %p231 = scmp.eq.s32.totalorder %s22, 0
    %p232 = por %p230, %p231
    %p233 = scmp.ne.s32.totalorder %s221, %s222
    %p234 = scmp.eq.s32.totalorder %s23, 1
    %p235 = por %p233, %p234
    %p237 = scmp.ne.s32.totalorder %s222, %s236
    %p238 = scmp.eq.s32.totalorder %s23, 0
    %p239 = por %p237, %p238
    %s241 = sadd.s32 %s240, 1
    %p244 = scmp.eq.s32.totalorder %s17, 1
    %p245 = scmp.ne.s32.totalorder %s240, %s242
    %p246 = scmp.eq.s32.totalorder %s17, 0
    %p247 = por %p245, %p246
    %p248 = scmp.ne.s32.totalorder %s240, %s242
    %p249 = scmp.eq.s32.totalorder %s22, 1
    %p250 = por %p248, %p249
    %p251 = scmp.ne.s32.totalorder %s242, %s243
    %p252 = scmp.eq.s32.totalorder %s22, 0
    %p253 = por %p251, %p252
    %p254 = scmp.ne.s32.totalorder %s242, %s243
    %p255 = scmp.eq.s32.totalorder %s23, 1
    %p256 = por %p254, %p255
    %p258 = scmp.ne.s32.totalorder %s243, %s257
    %p259 = scmp.eq.s32.totalorder %s23, 0
    %p260 = por %p258, %p259
    %s261 = ssub.s32 %s17, %s24
    %p262 = scmp.eq.s32.totalorder %s261, 0
    %s264 = sadd.s32 %s263, 1
    %s265 = scalar_select %p262, %s263, %s264
    %p268 = pneg %p262
    %p269 = scmp.eq.s32.totalorder %s17, 1
    %p270 = por %p268, %p269
    %p271 = scmp.ne.s32.totalorder %s263, %s266
    %p272 = scmp.eq.s32.totalorder %s17, 0
    %p273 = por %p271, %p272
    %p274 = scmp.ne.s32.totalorder %s263, %s266
    %p275 = scmp.eq.s32.totalorder %s22, 1
    %p276 = por %p274, %p275
    %p277 = scmp.ne.s32.totalorder %s266, %s267
    %p278 = scmp.eq.s32.totalorder %s22, 0
    %p279 = por %p277, %p278
    %p280 = scmp.ne.s32.totalorder %s266, %s267
    %p281 = scmp.eq.s32.totalorder %s23, 1
    %p282 = por %p280, %p281
    %p284 = scmp.ne.s32.totalorder %s267, %s283
    %p285 = scmp.eq.s32.totalorder %s23, 0
    %p286 = por %p284, %p285
    %p287 = scmp.le.s32.totalorder 1, %s17
    %p288 = scmp.lt.s32.totalorder %s17, 3
    %p289 = pnand %p287, %p288
    %p290 = pneg %p289
    // Predicated region
    $region9: #{pinn_forward.1} parent=5 // pred_check
      _
    $region10: #{pinn_forward.1} parent=5 // pred_check_branch
      %292 = sbr.rel (%p289) target = $region12
    $region11: #{pinn_forward.1} parent=5 // pred_region
      %s293 = ssub.s32 %s17, 1
      // Predicated region
      $region13: #{pinn_forward.1} parent=11 // pred_check
        %p294 = pneg %p64
      $region14: #{pinn_forward.1} parent=11 // pred_check_branch
        %296 = sbr.rel (%p294) target = $region16
      $region15: #{pinn_forward.1} parent=11 // pred_region
        _
      $region16: #{pinn_forward.1} parent=11 // pred_fallthru
        _
      // Predicated region
      $region17: #{pinn_forward.1} parent=11 // pred_check
        %p297 = pneg %p85
      $region18: #{pinn_forward.1} parent=11 // pred_check_branch
        %299 = sbr.rel (%p297) target = $region20
      $region19: #{pinn_forward.1} parent=11 // pred_region
        _
      $region20: #{pinn_forward.1} parent=11 // pred_fallthru
        _
      // Predicated region
      $region21: #{pinn_forward.1} parent=11 // pred_check
        %p300 = pneg %p106
      $region22: #{pinn_forward.1} parent=11 // pred_check_branch
        %302 = sbr.rel (%p300) target = $region24
      $region23: #{pinn_forward.1} parent=11 // pred_region
        _
      $region24: #{pinn_forward.1} parent=11 // pred_fallthru
        _
      // Predicated region
      $region25: #{pinn_forward.1} parent=11 // pred_check
        %p303 = pneg %p127
      $region26: #{pinn_forward.1} parent=11 // pred_check_branch
        %305 = sbr.rel (%p303) target = $region28
      $region27: #{pinn_forward.1} parent=11 // pred_region
        _
      $region28: #{pinn_forward.1} parent=11 // pred_fallthru
        _
      // Predicated region
      $region29: #{pinn_forward.1} parent=11 // pred_check
        %p306 = pneg %p148
      $region30: #{pinn_forward.1} parent=11 // pred_check_branch
        %308 = sbr.rel (%p306) target = $region32
      $region31: #{pinn_forward.1} parent=11 // pred_region
        _
      $region32: #{pinn_forward.1} parent=11 // pred_fallthru
        _
      // Predicated region
      $region33: #{pinn_forward.1} parent=11 // pred_check
        %p309 = pneg %p169
      $region34: #{pinn_forward.1} parent=11 // pred_check_branch
        %311 = sbr.rel (%p309) target = $region36
      $region35: #{pinn_forward.1} parent=11 // pred_region
        _
      $region36: #{pinn_forward.1} parent=11 // pred_fallthru
        _
      // Predicated region
      $region37: #{pinn_forward.1} parent=11 // pred_check
        %p312 = pneg %p190
      $region38: #{pinn_forward.1} parent=11 // pred_check_branch
        %314 = sbr.rel (%p312) target = $region40
      $region39: #{pinn_forward.1} parent=11 // pred_region
        _
      $region40: #{pinn_forward.1} parent=11 // pred_fallthru
        _
      // Predicated region
      $region41: #{pinn_forward.1} parent=11 // pred_check
        %p315 = pneg %p211
      $region42: #{pinn_forward.1} parent=11 // pred_check_branch
        %317 = sbr.rel (%p315) target = $region44
      $region43: #{pinn_forward.1} parent=11 // pred_region
        _
      $region44: #{pinn_forward.1} parent=11 // pred_fallthru
        _
      // Predicated region
      $region45: #{pinn_forward.1} parent=11 // pred_check
        %p318 = pneg %p232
      $region46: #{pinn_forward.1} parent=11 // pred_check_branch
        %320 = sbr.rel (%p318) target = $region48
      $region47: #{pinn_forward.1} parent=11 // pred_region
        _
      $region48: #{pinn_forward.1} parent=11 // pred_fallthru
        _
      // Predicated region
      $region49: #{pinn_forward.1} parent=11 // pred_check
        %p321 = pneg %p253
      $region50: #{pinn_forward.1} parent=11 // pred_check_branch
        %323 = sbr.rel (%p321) target = $region52
      $region51: #{pinn_forward.1} parent=11 // pred_region
        _
      $region52: #{pinn_forward.1} parent=11 // pred_fallthru
        _
    $region12: #{pinn_forward.1} parent=5 // pred_fallthru
      _
    %p324 = scmp.lt.s32.totalorder %s17, 2
    // Predicated region
    $region53: #{pinn_forward.1} parent=5 // pred_check
      %p325 = pneg %p324
    $region54: #{pinn_forward.1} parent=5 // pred_check_branch
      %327 = sbr.rel (%p325) target = $region56
    $region55: #{pinn_forward.1} parent=5 // pred_region
      // Predicated region
      $region57: #{pinn_forward.1} parent=55 // pred_check
        %p328 = pneg %p37
      $region58: #{pinn_forward.1} parent=55 // pred_check_branch
        %330 = sbr.rel (%p328) target = $region60
      $region59: #{pinn_forward.1} parent=55 // pred_region
        %s331 = smul.u32 32, %s17
        %p332 = scmp.lt.s32.totalorder %s331, 63
        %s333 = scalar_select %p332, %s331, 63
        %s334 = smul.addr %s333, 8
        %s335 = scalar_lea.vmem %s0, %s334
        %s336 = smul.u32 32, %s17
      $region60: #{pinn_forward.1} parent=55 // pred_fallthru
        _
    $region56: #{pinn_forward.1} parent=5 // pred_fallthru
      _
    %p337 = scmp.le.s32.totalorder 1, %s17
    %p338 = scmp.lt.s32.totalorder %s17, 3
    %p339 = pnand %p337, %p338
    %p340 = pneg %p339
    // Predicated region
    $region61: #{pinn_forward.1} parent=5 // pred_check
      _
    $region62: #{pinn_forward.1} parent=5 // pred_check_branch
      %342 = sbr.rel (%p339) target = $region64
    $region63: #{pinn_forward.1} parent=5 // pred_region
      %s343 = ssub.s32 %s17, 1
      %s344 = smul.u32 32, %s22
      %p345 = scmp.lt.s32.totalorder %s344, 63
      %s346 = scalar_select %p345, %s344, 63
      %s347 = smul.addr %s346, 8
      %s348 = scalar_lea.vmem %s0, %s347
      %p349 = pneg %p43
      %p350 = pneg %p40
      %p351 = pneg %p64
      %p352 = pneg %p61
      %p353 = pneg %p85
      %p354 = pneg %p82
      %p355 = pneg %p106
      %p356 = pneg %p103
      %p357 = pneg %p127
      %p358 = pneg %p124
      %p359 = pneg %p148
      %p360 = pneg %p145
      %p361 = pneg %p169
      %p362 = pneg %p166
      %p363 = pneg %p190
      %p364 = pneg %p187
      %p365 = pneg %p211
      %p366 = pneg %p208
      %p367 = pneg %p232
      %p368 = pneg %p229
      %p369 = pneg %p253
      %p370 = pneg %p250
      %p371 = pneg %p279
      %p372 = pneg %p276
      %s373 = smul.u32 32, %s22
      %p374 = scmp.lt.s32.totalorder %s373, 63
      %s375 = scalar_select %p374, %s373, 63
      %s376 = smul.addr %s375, 8
      %s377 = scalar_lea.vmem %s11, %s376
      %s378 = smul.u32 32, %s22
      %p379 = scmp.lt.s32.totalorder %s378, 63
      %s380 = scalar_select %p379, %s378, 63
      %s381 = smul.addr %s380, 8
      %s382 = scalar_lea.vmem %s0, %s381
      %s383 = smul.u32 32, %s22
      %s384 = smul.u32 32, %s22
      %p385 = scmp.lt.s32.totalorder %s384, 63
      %s386 = scalar_select %p385, %s384, 63
      %s387 = smul.addr %s386, 8
      %s388 = scalar_lea.vmem %s11, %s387
      %s389 = smul.u32 32, %s22
      %v390 = vld [vmem:[%s382] sm:$0xff]
      %v391 = vld [vmem:[%s382 + $0x8] sm:$0xff]
      %v392 = vld [vmem:[%s382 + $0x10] sm:$0xff]
      %v393 = vld [vmem:[%s382 + $0x18] sm:$0xff]
      %v394 = vld [vmem:[%s382 + $0x20] sm:$0xff]
      %v395 = vld [vmem:[%s382 + $0x28] sm:$0xff]
      %v396 = vld [vmem:[%s382 + $0x30] sm:$0xff]
      %v397 = vld [vmem:[%s382 + $0x38] sm:$0xff]
      %v398 = vld [vmem:[%s382 + $0x40] sm:$0xff]
      %v399 = vld [vmem:[%s382 + $0x48] sm:$0xff]
      %v400 = vld [vmem:[%s382 + $0x50] sm:$0xff]
      %v401 = vld [vmem:[%s382 + $0x58] sm:$0xff]
      %v402 = vld [vmem:[%s382 + $0x60] sm:$0xff]
      %v403 = vld [vmem:[%s382 + $0x68] sm:$0xff]
      %v404 = vld [vmem:[%s382 + $0x70] sm:$0xff]
      %v405 = vld [vmem:[%s382 + $0x78] sm:$0xff]
      %v406 = vld [vmem:[%s382 + $0x80] sm:$0xff]
      %v407 = vld [vmem:[%s382 + $0x88] sm:$0xff]
      %v408 = vld [vmem:[%s382 + $0x90] sm:$0xff]
      %v409 = vld [vmem:[%s382 + $0x98] sm:$0xff]
      %v410 = vld [vmem:[%s382 + $0xa0] sm:$0xff]
      %v411 = vld [vmem:[%s382 + $0xa8] sm:$0xff]
      %v412 = vld [vmem:[%s382 + $0xb0] sm:$0xff]
      %v413 = vld [vmem:[%s382 + $0xb8] sm:$0xff]
      %v414 = vld [vmem:[%s382 + $0xc0] sm:$0xff]
      %v415 = vld [vmem:[%s382 + $0xc8] sm:$0xff]
      %v416 = vld [vmem:[%s382 + $0xd0] sm:$0xff]
      %v417 = vld [vmem:[%s382 + $0xd8] sm:$0xff]
      %v418 = vld [vmem:[%s382 + $0xe0] sm:$0xff]
      %v419 = vld [vmem:[%s382 + $0xe8] sm:$0xff]
      %v420 = vld [vmem:[%s382 + $0xf0] sm:$0xff]
      %v421 = vld [vmem:[%s382 + $0xf8] sm:$0xff]
      %v422 = vld [vmem:[%s1] sm:$0xf]
      %v423 = vld [vmem:[%s2] sm:$0x1]
      %v425 = vperm.slane %v423, 0
      %vm427 = vcmask 31744
      %v429 = vsel %vm427, %v390, 0
      %v432 = vsel %vm427, %v391, 0
      %v435 = vsel %vm427, %v392, 0
      %v438 = vsel %vm427, %v393, 0
      %v441 = vsel %vm427, %v394, 0
      %v444 = vsel %vm427, %v395, 0
      %v447 = vsel %vm427, %v396, 0
      %v450 = vsel %vm427, %v397, 0
      %v453 = vsel %vm427, %v398, 0
      %v456 = vsel %vm427, %v399, 0
      %v459 = vsel %vm427, %v400, 0
      %v462 = vsel %vm427, %v401, 0
      %v465 = vsel %vm427, %v402, 0
      %v468 = vsel %vm427, %v403, 0
      %v471 = vsel %vm427, %v404, 0
      %v474 = vsel %vm427, %v405, 0
      %v477 = vsel %vm427, %v406, 0
      %v480 = vsel %vm427, %v407, 0
      %v483 = vsel %vm427, %v408, 0
      %v486 = vsel %vm427, %v409, 0
      %v489 = vsel %vm427, %v410, 0
      %v492 = vsel %vm427, %v411, 0
      %v495 = vsel %vm427, %v412, 0
      %v498 = vsel %vm427, %v413, 0
      %v501 = vsel %vm427, %v414, 0
      %v504 = vsel %vm427, %v415, 0
      %v507 = vsel %vm427, %v416, 0
      %v510 = vsel %vm427, %v417, 0
      %v513 = vsel %vm427, %v418, 0
      %v516 = vsel %vm427, %v419, 0
      %v519 = vsel %vm427, %v420, 0
      %v522 = vsel %vm427, %v421, 0
      %vm524 = vcmask 1043456
      %v526 = vsel %vm524, %v422, 0
      %528 = vmatpush.msra.mxu0 0.0
      %529 = vmatpush.msra.mxu0 0.0
      %530 = vmatpush.msra.mxu0 0.0
      %531 = vmatpush.msra.mxu0 0.0
      %532 = vmatpush.msra.mxu0 0.0
      %533 = vmatpush.msra.mxu0 0.0
      %534 = vmatpush.msra.mxu0 0.0
      %535 = vmatpush.msra.mxu0 0.0
      %536 = vmatpush.msra.mxu0 0.0
      %537 = vmatpush.msra.mxu0 0.0
      %538 = vmatpush.msra.mxu0 0.0
      %539 = vmatpush.msra.mxu0 0.0
      %540 = vmatpush.msra.mxu0 0.0
      %541 = vmatpush.msra.mxu0 0.0
      %542 = vmatpush.msra.mxu0 0.0
      %543 = vmatpush.msra.mxu0 %v526
      %544 = vmatmul.f32.gmra.mxu0 %v429
      %v545 = vpop.f32.mrf.mxu0
      %v546 = vadd.f32 %v425, %v545
      %547 = vmatmul.f32.gmra.mxu0 %v432
      %v548 = vpop.f32.mrf.mxu0
      %v549 = vadd.f32 %v425, %v548
      %550 = vmatmul.f32.gmra.mxu0 %v435
      %v551 = vpop.f32.mrf.mxu0
      %v552 = vadd.f32 %v425, %v551
      %553 = vmatmul.f32.gmra.mxu0 %v438
      %v554 = vpop.f32.mrf.mxu0
      %v555 = vadd.f32 %v425, %v554
      %556 = vmatmul.f32.gmra.mxu0 %v441
      %v557 = vpop.f32.mrf.mxu0
      %v558 = vadd.f32 %v425, %v557
      %559 = vmatmul.f32.gmra.mxu0 %v444
      %v560 = vpop.f32.mrf.mxu0
      %v561 = vadd.f32 %v425, %v560
      %562 = vmatmul.f32.gmra.mxu0 %v447
      %v563 = vpop.f32.mrf.mxu0
      %v564 = vadd.f32 %v425, %v563
      %565 = vmatmul.f32.gmra.mxu0 %v450
      %v566 = vpop.f32.mrf.mxu0
      %v567 = vadd.f32 %v425, %v566
      %568 = vmatmul.f32.gmra.mxu0 %v453
      %v569 = vpop.f32.mrf.mxu0
      %v570 = vadd.f32 %v425, %v569
      %571 = vmatmul.f32.gmra.mxu0 %v456
      %v572 = vpop.f32.mrf.mxu0
      %v573 = vadd.f32 %v425, %v572
      %574 = vmatmul.f32.gmra.mxu0 %v459
      %v575 = vpop.f32.mrf.mxu0
      %v576 = vadd.f32 %v425, %v575
      %577 = vmatmul.f32.gmra.mxu0 %v462
      %v578 = vpop.f32.mrf.mxu0
      %v579 = vadd.f32 %v425, %v578
      %580 = vmatmul.f32.gmra.mxu0 %v465
      %v581 = vpop.f32.mrf.mxu0
      %v582 = vadd.f32 %v425, %v581
      %583 = vmatmul.f32.gmra.mxu0 %v468
      %v584 = vpop.f32.mrf.mxu0
      %v585 = vadd.f32 %v425, %v584
      %586 = vmatmul.f32.gmra.mxu0 %v471
      %v587 = vpop.f32.mrf.mxu0
      %v588 = vadd.f32 %v425, %v587
      %589 = vmatmul.f32.gmra.mxu0 %v474
      %v590 = vpop.f32.mrf.mxu0
      %v591 = vadd.f32 %v425, %v590
      %592 = vmatmul.f32.gmra.mxu0 %v477
      %v593 = vpop.f32.mrf.mxu0
      %v594 = vadd.f32 %v425, %v593
      %595 = vmatmul.f32.gmra.mxu0 %v480
      %v596 = vpop.f32.mrf.mxu0
      %v597 = vadd.f32 %v425, %v596
      %598 = vmatmul.f32.gmra.mxu0 %v483
      %v599 = vpop.f32.mrf.mxu0
      %v600 = vadd.f32 %v425, %v599
      %601 = vmatmul.f32.gmra.mxu0 %v486
      %v602 = vpop.f32.mrf.mxu0
      %v603 = vadd.f32 %v425, %v602
      %604 = vmatmul.f32.gmra.mxu0 %v489
      %v605 = vpop.f32.mrf.mxu0
      %v606 = vadd.f32 %v425, %v605
      %607 = vmatmul.f32.gmra.mxu0 %v492
      %v608 = vpop.f32.mrf.mxu0
      %v609 = vadd.f32 %v425, %v608
      %610 = vmatmul.f32.gmra.mxu0 %v495
      %v611 = vpop.f32.mrf.mxu0
      %v612 = vadd.f32 %v425, %v611
      %613 = vmatmul.f32.gmra.mxu0 %v498
      %v614 = vpop.f32.mrf.mxu0
      %v615 = vadd.f32 %v425, %v614
      %616 = vmatmul.f32.gmra.mxu0 %v501
      %v617 = vpop.f32.mrf.mxu0
      %v618 = vadd.f32 %v425, %v617
      %619 = vmatmul.f32.gmra.mxu0 %v504
      %v620 = vpop.f32.mrf.mxu0
      %v621 = vadd.f32 %v425, %v620
      %622 = vmatmul.f32.gmra.mxu0 %v507
      %v623 = vpop.f32.mrf.mxu0
      %v624 = vadd.f32 %v425, %v623
      %625 = vmatmul.f32.gmra.mxu0 %v510
      %v626 = vpop.f32.mrf.mxu0
      %v627 = vadd.f32 %v425, %v626
      %628 = vmatmul.f32.gmra.mxu0 %v513
      %v629 = vpop.f32.mrf.mxu0
      %v630 = vadd.f32 %v425, %v629
      %631 = vmatmul.f32.gmra.mxu0 %v516
      %v632 = vpop.f32.mrf.mxu0
      %v633 = vadd.f32 %v425, %v632
      %634 = vmatmul.f32.gmra.mxu0 %v519
      %v635 = vpop.f32.mrf.mxu0
      %v636 = vadd.f32 %v425, %v635
      %637 = vmatmul.f32.gmra.mxu0 %v522
      %v638 = vpop.f32.mrf.mxu0
      %v639 = vadd.f32 %v425, %v638
      %640 = vdwg.mxu0
      %v641 = vmax.f32 %v546, 0.0
      %v642 = vmax.f32 %v549, 0.0
      %v643 = vmax.f32 %v552, 0.0
      %v644 = vmax.f32 %v555, 0.0
      %v645 = vmax.f32 %v558, 0.0
      %v646 = vmax.f32 %v561, 0.0
      %v647 = vmax.f32 %v564, 0.0
      %v648 = vmax.f32 %v567, 0.0
      %v649 = vmax.f32 %v570, 0.0
      %v650 = vmax.f32 %v573, 0.0
      %v651 = vmax.f32 %v576, 0.0
      %v652 = vmax.f32 %v579, 0.0
      %v653 = vmax.f32 %v582, 0.0
      %v654 = vmax.f32 %v585, 0.0
      %v655 = vmax.f32 %v588, 0.0
      %v656 = vmax.f32 %v591, 0.0
      %v657 = vmax.f32 %v594, 0.0
      %v658 = vmax.f32 %v597, 0.0
      %v659 = vmax.f32 %v600, 0.0
      %v660 = vmax.f32 %v603, 0.0
      %v661 = vmax.f32 %v606, 0.0
      %v662 = vmax.f32 %v609, 0.0
      %v663 = vmax.f32 %v612, 0.0
      %v664 = vmax.f32 %v615, 0.0
      %v665 = vmax.f32 %v618, 0.0
      %v666 = vmax.f32 %v621, 0.0
      %v667 = vmax.f32 %v624, 0.0
      %v668 = vmax.f32 %v627, 0.0
      %v669 = vmax.f32 %v630, 0.0
      %v670 = vmax.f32 %v633, 0.0
      %v671 = vmax.f32 %v636, 0.0
      %v672 = vmax.f32 %v639, 0.0
      %v673 = vld [vmem:[%s3] sm:$0xff]
      %v674 = vld [vmem:[%s3 + $0x8] sm:$0xff]
      %v675 = vld [vmem:[%s3 + $0x10] sm:$0xff]
      %v676 = vld [vmem:[%s3 + $0x18] sm:$0xff]
      %v677 = vld [vmem:[%s3 + $0x20] sm:$0xff]
      %v678 = vld [vmem:[%s3 + $0x28] sm:$0xff]
      %v679 = vld [vmem:[%s3 + $0x30] sm:$0xff]
      %v680 = vld [vmem:[%s3 + $0x38] sm:$0xff]
      %v681 = vld [vmem:[%s3 + $0x40] sm:$0xff]
      %v682 = vld [vmem:[%s3 + $0x48] sm:$0xff]
      %v683 = vld [vmem:[%s3 + $0x50] sm:$0xff]
      %v684 = vld [vmem:[%s3 + $0x58] sm:$0xff]
      %v685 = vld [vmem:[%s3 + $0x60] sm:$0xff]
      %v686 = vld [vmem:[%s3 + $0x68] sm:$0xff]
      %v687 = vld [vmem:[%s3 + $0x70] sm:$0xff]
      %v688 = vld [vmem:[%s3 + $0x78] sm:$0xff]
      %v689 = vld [vmem:[%s4] sm:$0x1]
      %v691 = vperm.slane %v689, 0
      %693 = vmatpush.msra.mxu0 %v688
      %694 = vmatpush.msra.mxu0 %v687
      %695 = vmatpush.msra.mxu0 %v686
      %696 = vmatpush.msra.mxu0 %v685
      %697 = vmatpush.msra.mxu0 %v684
      %698 = vmatpush.msra.mxu0 %v683
      %699 = vmatpush.msra.mxu0 %v682
      %700 = vmatpush.msra.mxu0 %v681
      %701 = vmatpush.msra.mxu0 %v680
      %702 = vmatpush.msra.mxu0 %v679
      %703 = vmatpush.msra.mxu0 %v678
      %704 = vmatpush.msra.mxu0 %v677
      %705 = vmatpush.msra.mxu0 %v676
      %706 = vmatpush.msra.mxu0 %v675
      %707 = vmatpush.msra.mxu0 %v674
      %708 = vmatpush.msra.mxu0 %v673
      %709 = vmatmul.f32.gmra.mxu0 %v641
      %v710 = vpop.f32.mrf.mxu0
      %v711 = vadd.f32 %v691, %v710
      %712 = vmatmul.f32.gmra.mxu0 %v642
      %v713 = vpop.f32.mrf.mxu0
      %v714 = vadd.f32 %v691, %v713
      %715 = vmatmul.f32.gmra.mxu0 %v643
      %v716 = vpop.f32.mrf.mxu0
      %v717 = vadd.f32 %v691, %v716
      %718 = vmatmul.f32.gmra.mxu0 %v644
      %v719 = vpop.f32.mrf.mxu0
      %v720 = vadd.f32 %v691, %v719
      %721 = vmatmul.f32.gmra.mxu0 %v645
      %v722 = vpop.f32.mrf.mxu0
      %v723 = vadd.f32 %v691, %v722
      %724 = vmatmul.f32.gmra.mxu0 %v646
      %v725 = vpop.f32.mrf.mxu0
      %v726 = vadd.f32 %v691, %v725
      %727 = vmatmul.f32.gmra.mxu0 %v647
      %v728 = vpop.f32.mrf.mxu0
      %v729 = vadd.f32 %v691, %v728
      %730 = vmatmul.f32.gmra.mxu0 %v648
      %v731 = vpop.f32.mrf.mxu0
      %v732 = vadd.f32 %v691, %v731
      %733 = vmatmul.f32.gmra.mxu0 %v649
      %v734 = vpop.f32.mrf.mxu0
      %v735 = vadd.f32 %v691, %v734
      %736 = vmatmul.f32.gmra.mxu0 %v650
      %v737 = vpop.f32.mrf.mxu0
      %v738 = vadd.f32 %v691, %v737
      %739 = vmatmul.f32.gmra.mxu0 %v651
      %v740 = vpop.f32.mrf.mxu0
      %v741 = vadd.f32 %v691, %v740
      %742 = vmatmul.f32.gmra.mxu0 %v652
      %v743 = vpop.f32.mrf.mxu0
      %v744 = vadd.f32 %v691, %v743
      %745 = vmatmul.f32.gmra.mxu0 %v653
      %v746 = vpop.f32.mrf.mxu0
      %v747 = vadd.f32 %v691, %v746
      %748 = vmatmul.f32.gmra.mxu0 %v654
      %v749 = vpop.f32.mrf.mxu0
      %v750 = vadd.f32 %v691, %v749
      %751 = vmatmul.f32.gmra.mxu0 %v655
      %v752 = vpop.f32.mrf.mxu0
      %v753 = vadd.f32 %v691, %v752
      %754 = vmatmul.f32.gmra.mxu0 %v656
      %v755 = vpop.f32.mrf.mxu0
      %v756 = vadd.f32 %v691, %v755
      %757 = vmatmul.f32.gmra.mxu0 %v657
      %v758 = vpop.f32.mrf.mxu0
      %v759 = vadd.f32 %v691, %v758
      %760 = vmatmul.f32.gmra.mxu0 %v658
      %v761 = vpop.f32.mrf.mxu0
      %v762 = vadd.f32 %v691, %v761
      %763 = vmatmul.f32.gmra.mxu0 %v659
      %v764 = vpop.f32.mrf.mxu0
      %v765 = vadd.f32 %v691, %v764
      %766 = vmatmul.f32.gmra.mxu0 %v660
      %v767 = vpop.f32.mrf.mxu0
      %v768 = vadd.f32 %v691, %v767
      %769 = vmatmul.f32.gmra.mxu0 %v661
      %v770 = vpop.f32.mrf.mxu0
      %v771 = vadd.f32 %v691, %v770
      %772 = vmatmul.f32.gmra.mxu0 %v662
      %v773 = vpop.f32.mrf.mxu0
      %v774 = vadd.f32 %v691, %v773
      %775 = vmatmul.f32.gmra.mxu0 %v663
      %v776 = vpop.f32.mrf.mxu0
      %v777 = vadd.f32 %v691, %v776
      %778 = vmatmul.f32.gmra.mxu0 %v664
      %v779 = vpop.f32.mrf.mxu0
      %v780 = vadd.f32 %v691, %v779
      %781 = vmatmul.f32.gmra.mxu0 %v665
      %v782 = vpop.f32.mrf.mxu0
      %v783 = vadd.f32 %v691, %v782
      %784 = vmatmul.f32.gmra.mxu0 %v666
      %v785 = vpop.f32.mrf.mxu0
      %v786 = vadd.f32 %v691, %v785
      %787 = vmatmul.f32.gmra.mxu0 %v667
      %v788 = vpop.f32.mrf.mxu0
      %v789 = vadd.f32 %v691, %v788
      %790 = vmatmul.f32.gmra.mxu0 %v668
      %v791 = vpop.f32.mrf.mxu0
      %v792 = vadd.f32 %v691, %v791
      %793 = vmatmul.f32.gmra.mxu0 %v669
      %v794 = vpop.f32.mrf.mxu0
      %v795 = vadd.f32 %v691, %v794
      %796 = vmatmul.f32.gmra.mxu0 %v670
      %v797 = vpop.f32.mrf.mxu0
      %v798 = vadd.f32 %v691, %v797
      %799 = vmatmul.f32.gmra.mxu0 %v671
      %v800 = vpop.f32.mrf.mxu0
      %v801 = vadd.f32 %v691, %v800
      %802 = vmatmul.f32.gmra.mxu0 %v672
      %v803 = vpop.f32.mrf.mxu0
      %v804 = vadd.f32 %v691, %v803
      %805 = vdwg.mxu0
      %v806 = vmax.f32 %v711, 0.0
      %v807 = vmax.f32 %v714, 0.0
      %v808 = vmax.f32 %v717, 0.0
      %v809 = vmax.f32 %v720, 0.0
      %v810 = vmax.f32 %v723, 0.0
      %v811 = vmax.f32 %v726, 0.0
      %v812 = vmax.f32 %v729, 0.0
      %v813 = vmax.f32 %v732, 0.0
      %v814 = vmax.f32 %v735, 0.0
      %v815 = vmax.f32 %v738, 0.0
      %v816 = vmax.f32 %v741, 0.0
      %v817 = vmax.f32 %v744, 0.0
      %v818 = vmax.f32 %v747, 0.0
      %v819 = vmax.f32 %v750, 0.0
      %v820 = vmax.f32 %v753, 0.0
      %v821 = vmax.f32 %v756, 0.0
      %v822 = vmax.f32 %v759, 0.0
      %v823 = vmax.f32 %v762, 0.0
      %v824 = vmax.f32 %v765, 0.0
      %v825 = vmax.f32 %v768, 0.0
      %v826 = vmax.f32 %v771, 0.0
      %v827 = vmax.f32 %v774, 0.0
      %v828 = vmax.f32 %v777, 0.0
      %v829 = vmax.f32 %v780, 0.0
      %v830 = vmax.f32 %v783, 0.0
      %v831 = vmax.f32 %v786, 0.0
      %v832 = vmax.f32 %v789, 0.0
      %v833 = vmax.f32 %v792, 0.0
      %v834 = vmax.f32 %v795, 0.0
      %v835 = vmax.f32 %v798, 0.0
      %v836 = vmax.f32 %v801, 0.0
      %v837 = vmax.f32 %v804, 0.0
      %v838 = vld [vmem:[%s5] sm:$0xff]
      %v839 = vld [vmem:[%s5 + $0x8] sm:$0xff]
      %v840 = vld [vmem:[%s5 + $0x10] sm:$0xff]
      %v841 = vld [vmem:[%s5 + $0x18] sm:$0xff]
      %v842 = vld [vmem:[%s5 + $0x20] sm:$0xff]
      %v843 = vld [vmem:[%s5 + $0x28] sm:$0xff]
      %v844 = vld [vmem:[%s5 + $0x30] sm:$0xff]
      %v845 = vld [vmem:[%s5 + $0x38] sm:$0xff]
      %v846 = vld [vmem:[%s5 + $0x40] sm:$0xff]
      %v847 = vld [vmem:[%s5 + $0x48] sm:$0xff]
      %v848 = vld [vmem:[%s5 + $0x50] sm:$0xff]
      %v849 = vld [vmem:[%s5 + $0x58] sm:$0xff]
      %v850 = vld [vmem:[%s5 + $0x60] sm:$0xff]
      %v851 = vld [vmem:[%s5 + $0x68] sm:$0xff]
      %v852 = vld [vmem:[%s5 + $0x70] sm:$0xff]
      %v853 = vld [vmem:[%s5 + $0x78] sm:$0xff]
      %v854 = vld [vmem:[%s6] sm:$0x1]
      %v856 = vperm.slane %v854, 0
      %858 = vmatpush.msra.mxu0 %v853
      %859 = vmatpush.msra.mxu0 %v852
      %860 = vmatpush.msra.mxu0 %v851
      %861 = vmatpush.msra.mxu0 %v850
      %862 = vmatpush.msra.mxu0 %v849
      %863 = vmatpush.msra.mxu0 %v848
      %864 = vmatpush.msra.mxu0 %v847
      %865 = vmatpush.msra.mxu0 %v846
      %866 = vmatpush.msra.mxu0 %v845
      %867 = vmatpush.msra.mxu0 %v844
      %868 = vmatpush.msra.mxu0 %v843
      %869 = vmatpush.msra.mxu0 %v842
      %870 = vmatpush.msra.mxu0 %v841
      %871 = vmatpush.msra.mxu0 %v840
      %872 = vmatpush.msra.mxu0 %v839
      %873 = vmatpush.msra.mxu0 %v838
      %874 = vmatmul.f32.gmra.mxu0 %v806
      %v875 = vpop.f32.mrf.mxu0
      %v876 = vadd.f32 %v856, %v875
      %877 = vmatmul.f32.gmra.mxu0 %v807
      %v878 = vpop.f32.mrf.mxu0
      %v879 = vadd.f32 %v856, %v878
      %880 = vmatmul.f32.gmra.mxu0 %v808
      %v881 = vpop.f32.mrf.mxu0
      %v882 = vadd.f32 %v856, %v881
      %883 = vmatmul.f32.gmra.mxu0 %v809
      %v884 = vpop.f32.mrf.mxu0
      %v885 = vadd.f32 %v856, %v884
      %886 = vmatmul.f32.gmra.mxu0 %v810
      %v887 = vpop.f32.mrf.mxu0
      %v888 = vadd.f32 %v856, %v887
      %889 = vmatmul.f32.gmra.mxu0 %v811
      %v890 = vpop.f32.mrf.mxu0
      %v891 = vadd.f32 %v856, %v890
      %892 = vmatmul.f32.gmra.mxu0 %v812
      %v893 = vpop.f32.mrf.mxu0
      %v894 = vadd.f32 %v856, %v893
      %895 = vmatmul.f32.gmra.mxu0 %v813
      %v896 = vpop.f32.mrf.mxu0
      %v897 = vadd.f32 %v856, %v896
      %898 = vmatmul.f32.gmra.mxu0 %v814
      %v899 = vpop.f32.mrf.mxu0
      %v900 = vadd.f32 %v856, %v899
      %901 = vmatmul.f32.gmra.mxu0 %v815
      %v902 = vpop.f32.mrf.mxu0
      %v903 = vadd.f32 %v856, %v902
      %904 = vmatmul.f32.gmra.mxu0 %v816
      %v905 = vpop.f32.mrf.mxu0
      %v906 = vadd.f32 %v856, %v905
      %907 = vmatmul.f32.gmra.mxu0 %v817
      %v908 = vpop.f32.mrf.mxu0
      %v909 = vadd.f32 %v856, %v908
      %910 = vmatmul.f32.gmra.mxu0 %v818
      %v911 = vpop.f32.mrf.mxu0
      %v912 = vadd.f32 %v856, %v911
      %913 = vmatmul.f32.gmra.mxu0 %v819
      %v914 = vpop.f32.mrf.mxu0
      %v915 = vadd.f32 %v856, %v914
      %916 = vmatmul.f32.gmra.mxu0 %v820
      %v917 = vpop.f32.mrf.mxu0
      %v918 = vadd.f32 %v856, %v917
      %919 = vmatmul.f32.gmra.mxu0 %v821
      %v920 = vpop.f32.mrf.mxu0
      %v921 = vadd.f32 %v856, %v920
      %922 = vmatmul.f32.gmra.mxu0 %v822
      %v923 = vpop.f32.mrf.mxu0
      %v924 = vadd.f32 %v856, %v923
      %925 = vmatmul.f32.gmra.mxu0 %v823
      %v926 = vpop.f32.mrf.mxu0
      %v927 = vadd.f32 %v856, %v926
      %928 = vmatmul.f32.gmra.mxu0 %v824
      %v929 = vpop.f32.mrf.mxu0
      %v930 = vadd.f32 %v856, %v929
      %931 = vmatmul.f32.gmra.mxu0 %v825
      %v932 = vpop.f32.mrf.mxu0
      %v933 = vadd.f32 %v856, %v932
      %934 = vmatmul.f32.gmra.mxu0 %v826
      %v935 = vpop.f32.mrf.mxu0
      %v936 = vadd.f32 %v856, %v935
      %937 = vmatmul.f32.gmra.mxu0 %v827
      %v938 = vpop.f32.mrf.mxu0
      %v939 = vadd.f32 %v856, %v938
      %940 = vmatmul.f32.gmra.mxu0 %v828
      %v941 = vpop.f32.mrf.mxu0
      %v942 = vadd.f32 %v856, %v941
      %943 = vmatmul.f32.gmra.mxu0 %v829
      %v944 = vpop.f32.mrf.mxu0
      %v945 = vadd.f32 %v856, %v944
      %946 = vmatmul.f32.gmra.mxu0 %v830
      %v947 = vpop.f32.mrf.mxu0
      %v948 = vadd.f32 %v856, %v947
      %949 = vmatmul.f32.gmra.mxu0 %v831
      %v950 = vpop.f32.mrf.mxu0
      %v951 = vadd.f32 %v856, %v950
      %952 = vmatmul.f32.gmra.mxu0 %v832
      %v953 = vpop.f32.mrf.mxu0
      %v954 = vadd.f32 %v856, %v953
      %955 = vmatmul.f32.gmra.mxu0 %v833
      %v956 = vpop.f32.mrf.mxu0
      %v957 = vadd.f32 %v856, %v956
      %958 = vmatmul.f32.gmra.mxu0 %v834
      %v959 = vpop.f32.mrf.mxu0
      %v960 = vadd.f32 %v856, %v959
      %961 = vmatmul.f32.gmra.mxu0 %v835
      %v962 = vpop.f32.mrf.mxu0
      %v963 = vadd.f32 %v856, %v962
      %964 = vmatmul.f32.gmra.mxu0 %v836
      %v965 = vpop.f32.mrf.mxu0
      %v966 = vadd.f32 %v856, %v965
      %967 = vmatmul.f32.gmra.mxu0 %v837
      %v968 = vpop.f32.mrf.mxu0
      %v969 = vadd.f32 %v856, %v968
      %970 = vdwg.mxu0
      %v971 = vmax.f32 %v876, 0.0
      %v972 = vmax.f32 %v879, 0.0
      %v973 = vmax.f32 %v882, 0.0
      %v974 = vmax.f32 %v885, 0.0
      %v975 = vmax.f32 %v888, 0.0
      %v976 = vmax.f32 %v891, 0.0
      %v977 = vmax.f32 %v894, 0.0
      %v978 = vmax.f32 %v897, 0.0
      %v979 = vmax.f32 %v900, 0.0
      %v980 = vmax.f32 %v903, 0.0
      %v981 = vmax.f32 %v906, 0.0
      %v982 = vmax.f32 %v909, 0.0
      %v983 = vmax.f32 %v912, 0.0
      %v984 = vmax.f32 %v915, 0.0
      %v985 = vmax.f32 %v918, 0.0
      %v986 = vmax.f32 %v921, 0.0
      %v987 = vmax.f32 %v924, 0.0
      %v988 = vmax.f32 %v927, 0.0
      %v989 = vmax.f32 %v930, 0.0
      %v990 = vmax.f32 %v933, 0.0
      %v991 = vmax.f32 %v936, 0.0
      %v992 = vmax.f32 %v939, 0.0
      %v993 = vmax.f32 %v942, 0.0
      %v994 = vmax.f32 %v945, 0.0
      %v995 = vmax.f32 %v948, 0.0
      %v996 = vmax.f32 %v951, 0.0
      %v997 = vmax.f32 %v954, 0.0
      %v998 = vmax.f32 %v957, 0.0
      %v999 = vmax.f32 %v960, 0.0
      %v1000 = vmax.f32 %v963, 0.0
      %v1001 = vmax.f32 %v966, 0.0
      %v1002 = vmax.f32 %v969, 0.0
      %v1003 = vld [vmem:[%s7] sm:$0xff]
      %v1004 = vld [vmem:[%s7 + $0x8] sm:$0xff]
      %v1005 = vld [vmem:[%s7 + $0x10] sm:$0xff]
      %v1006 = vld [vmem:[%s7 + $0x18] sm:$0xff]
      %v1007 = vld [vmem:[%s7 + $0x20] sm:$0xff]
      %v1008 = vld [vmem:[%s7 + $0x28] sm:$0xff]
      %v1009 = vld [vmem:[%s7 + $0x30] sm:$0xff]
      %v1010 = vld [vmem:[%s7 + $0x38] sm:$0xff]
      %v1011 = vld [vmem:[%s7 + $0x40] sm:$0xff]
      %v1012 = vld [vmem:[%s7 + $0x48] sm:$0xff]
      %v1013 = vld [vmem:[%s7 + $0x50] sm:$0xff]
      %v1014 = vld [vmem:[%s7 + $0x58] sm:$0xff]
      %v1015 = vld [vmem:[%s7 + $0x60] sm:$0xff]
      %v1016 = vld [vmem:[%s7 + $0x68] sm:$0xff]
      %v1017 = vld [vmem:[%s7 + $0x70] sm:$0xff]
      %v1018 = vld [vmem:[%s7 + $0x78] sm:$0xff]
      %v1019 = vld [vmem:[%s8] sm:$0x1]
      %v1021 = vperm.slane %v1019, 0
      %1023 = vmatpush.msra.mxu0 %v1018
      %1024 = vmatpush.msra.mxu0 %v1017
      %1025 = vmatpush.msra.mxu0 %v1016
      %1026 = vmatpush.msra.mxu0 %v1015
      %1027 = vmatpush.msra.mxu0 %v1014
      %1028 = vmatpush.msra.mxu0 %v1013
      %1029 = vmatpush.msra.mxu0 %v1012
      %1030 = vmatpush.msra.mxu0 %v1011
      %1031 = vmatpush.msra.mxu0 %v1010
      %1032 = vmatpush.msra.mxu0 %v1009
      %1033 = vmatpush.msra.mxu0 %v1008
      %1034 = vmatpush.msra.mxu0 %v1007
      %1035 = vmatpush.msra.mxu0 %v1006
      %1036 = vmatpush.msra.mxu0 %v1005
      %1037 = vmatpush.msra.mxu0 %v1004
      %1038 = vmatpush.msra.mxu0 %v1003
      %1039 = vmatmul.f32.gmra.mxu0 %v971
      %v1040 = vpop.f32.mrf.mxu0
      %v1041 = vadd.f32 %v1021, %v1040
      %1042 = vmatmul.f32.gmra.mxu0 %v972
      %v1043 = vpop.f32.mrf.mxu0
      %v1044 = vadd.f32 %v1021, %v1043
      %1045 = vmatmul.f32.gmra.mxu0 %v973
      %v1046 = vpop.f32.mrf.mxu0
      %v1047 = vadd.f32 %v1021, %v1046
      %1048 = vmatmul.f32.gmra.mxu0 %v974
      %v1049 = vpop.f32.mrf.mxu0
      %v1050 = vadd.f32 %v1021, %v1049
      %1051 = vmatmul.f32.gmra.mxu0 %v975
      %v1052 = vpop.f32.mrf.mxu0
      %v1053 = vadd.f32 %v1021, %v1052
      %1054 = vmatmul.f32.gmra.mxu0 %v976
      %v1055 = vpop.f32.mrf.mxu0
      %v1056 = vadd.f32 %v1021, %v1055
      %1057 = vmatmul.f32.gmra.mxu0 %v977
      %v1058 = vpop.f32.mrf.mxu0
      %v1059 = vadd.f32 %v1021, %v1058
      %1060 = vmatmul.f32.gmra.mxu0 %v978
      %v1061 = vpop.f32.mrf.mxu0
      %v1062 = vadd.f32 %v1021, %v1061
      %1063 = vmatmul.f32.gmra.mxu0 %v979
      %v1064 = vpop.f32.mrf.mxu0
      %v1065 = vadd.f32 %v1021, %v1064
      %1066 = vmatmul.f32.gmra.mxu0 %v980
      %v1067 = vpop.f32.mrf.mxu0
      %v1068 = vadd.f32 %v1021, %v1067
      %1069 = vmatmul.f32.gmra.mxu0 %v981
      %v1070 = vpop.f32.mrf.mxu0
      %v1071 = vadd.f32 %v1021, %v1070
      %1072 = vmatmul.f32.gmra.mxu0 %v982
      %v1073 = vpop.f32.mrf.mxu0
      %v1074 = vadd.f32 %v1021, %v1073
      %1075 = vmatmul.f32.gmra.mxu0 %v983
      %v1076 = vpop.f32.mrf.mxu0
      %v1077 = vadd.f32 %v1021, %v1076
      %1078 = vmatmul.f32.gmra.mxu0 %v984
      %v1079 = vpop.f32.mrf.mxu0
      %v1080 = vadd.f32 %v1021, %v1079
      %1081 = vmatmul.f32.gmra.mxu0 %v985
      %v1082 = vpop.f32.mrf.mxu0
      %v1083 = vadd.f32 %v1021, %v1082
      %1084 = vmatmul.f32.gmra.mxu0 %v986
      %v1085 = vpop.f32.mrf.mxu0
      %v1086 = vadd.f32 %v1021, %v1085
      %1087 = vmatmul.f32.gmra.mxu0 %v987
      %v1088 = vpop.f32.mrf.mxu0
      %v1089 = vadd.f32 %v1021, %v1088
      %1090 = vmatmul.f32.gmra.mxu0 %v988
      %v1091 = vpop.f32.mrf.mxu0
      %v1092 = vadd.f32 %v1021, %v1091
      %1093 = vmatmul.f32.gmra.mxu0 %v989
      %v1094 = vpop.f32.mrf.mxu0
      %v1095 = vadd.f32 %v1021, %v1094
      %1096 = vmatmul.f32.gmra.mxu0 %v990
      %v1097 = vpop.f32.mrf.mxu0
      %v1098 = vadd.f32 %v1021, %v1097
      %1099 = vmatmul.f32.gmra.mxu0 %v991
      %v1100 = vpop.f32.mrf.mxu0
      %v1101 = vadd.f32 %v1021, %v1100
      %1102 = vmatmul.f32.gmra.mxu0 %v992
      %v1103 = vpop.f32.mrf.mxu0
      %v1104 = vadd.f32 %v1021, %v1103
      %1105 = vmatmul.f32.gmra.mxu0 %v993
      %v1106 = vpop.f32.mrf.mxu0
      %v1107 = vadd.f32 %v1021, %v1106
      %1108 = vmatmul.f32.gmra.mxu0 %v994
      %v1109 = vpop.f32.mrf.mxu0
      %v1110 = vadd.f32 %v1021, %v1109
      %1111 = vmatmul.f32.gmra.mxu0 %v995
      %v1112 = vpop.f32.mrf.mxu0
      %v1113 = vadd.f32 %v1021, %v1112
      %1114 = vmatmul.f32.gmra.mxu0 %v996
      %v1115 = vpop.f32.mrf.mxu0
      %v1116 = vadd.f32 %v1021, %v1115
      %1117 = vmatmul.f32.gmra.mxu0 %v997
      %v1118 = vpop.f32.mrf.mxu0
      %v1119 = vadd.f32 %v1021, %v1118
      %1120 = vmatmul.f32.gmra.mxu0 %v998
      %v1121 = vpop.f32.mrf.mxu0
      %v1122 = vadd.f32 %v1021, %v1121
      %1123 = vmatmul.f32.gmra.mxu0 %v999
      %v1124 = vpop.f32.mrf.mxu0
      %v1125 = vadd.f32 %v1021, %v1124
      %1126 = vmatmul.f32.gmra.mxu0 %v1000
      %v1127 = vpop.f32.mrf.mxu0
      %v1128 = vadd.f32 %v1021, %v1127
      %1129 = vmatmul.f32.gmra.mxu0 %v1001
      %v1130 = vpop.f32.mrf.mxu0
      %v1131 = vadd.f32 %v1021, %v1130
      %1132 = vmatmul.f32.gmra.mxu0 %v1002
      %v1133 = vpop.f32.mrf.mxu0
      %v1134 = vadd.f32 %v1021, %v1133
      %1135 = vdwg.mxu0
      %v1136 = vmax.f32 %v1041, 0.0
      %v1137 = vmax.f32 %v1044, 0.0
      %v1138 = vmax.f32 %v1047, 0.0
      %v1139 = vmax.f32 %v1050, 0.0
      %v1140 = vmax.f32 %v1053, 0.0
      %v1141 = vmax.f32 %v1056, 0.0
      %v1142 = vmax.f32 %v1059, 0.0
      %v1143 = vmax.f32 %v1062, 0.0
      %v1144 = vmax.f32 %v1065, 0.0
      %v1145 = vmax.f32 %v1068, 0.0
      %v1146 = vmax.f32 %v1071, 0.0
      %v1147 = vmax.f32 %v1074, 0.0
      %v1148 = vmax.f32 %v1077, 0.0
      %v1149 = vmax.f32 %v1080, 0.0
      %v1150 = vmax.f32 %v1083, 0.0
      %v1151 = vmax.f32 %v1086, 0.0
      %v1152 = vmax.f32 %v1089, 0.0
      %v1153 = vmax.f32 %v1092, 0.0
      %v1154 = vmax.f32 %v1095, 0.0
      %v1155 = vmax.f32 %v1098, 0.0
      %v1156 = vmax.f32 %v1101, 0.0
      %v1157 = vmax.f32 %v1104, 0.0
      %v1158 = vmax.f32 %v1107, 0.0
      %v1159 = vmax.f32 %v1110, 0.0
      %v1160 = vmax.f32 %v1113, 0.0
      %v1161 = vmax.f32 %v1116, 0.0
      %v1162 = vmax.f32 %v1119, 0.0
      %v1163 = vmax.f32 %v1122, 0.0
      %v1164 = vmax.f32 %v1125, 0.0
      %v1165 = vmax.f32 %v1128, 0.0
      %v1166 = vmax.f32 %v1131, 0.0
      %v1167 = vmax.f32 %v1134, 0.0
      %v1168 = vld [vmem:[%s9] sm:$0xff]
      %v1169 = vld [vmem:[%s9 + $0x8] sm:$0xff]
      %v1170 = vld [vmem:[%s9 + $0x10] sm:$0xff]
      %v1171 = vld [vmem:[%s9 + $0x18] sm:$0xff]
      %v1172 = vld [vmem:[%s9 + $0x20] sm:$0xff]
      %v1173 = vld [vmem:[%s9 + $0x28] sm:$0xff]
      %v1174 = vld [vmem:[%s9 + $0x30] sm:$0xff]
      %v1175 = vld [vmem:[%s9 + $0x38] sm:$0xff]
      %v1176 = vld [vmem:[%s9 + $0x40] sm:$0xff]
      %v1177 = vld [vmem:[%s9 + $0x48] sm:$0xff]
      %v1178 = vld [vmem:[%s9 + $0x50] sm:$0xff]
      %v1179 = vld [vmem:[%s9 + $0x58] sm:$0xff]
      %v1180 = vld [vmem:[%s9 + $0x60] sm:$0xff]
      %v1181 = vld [vmem:[%s9 + $0x68] sm:$0xff]
      %v1182 = vld [vmem:[%s9 + $0x70] sm:$0xff]
      %v1183 = vld [vmem:[%s9 + $0x78] sm:$0xff]
      %v1184 = vld [vmem:[%s10] sm:$0x1]
      %v1186 = vperm.slane %v1184, 0
      %1188 = vmatpush.msra.mxu0 %v1183
      %1189 = vmatpush.msra.mxu0 %v1182
      %1190 = vmatpush.msra.mxu0 %v1181
      %1191 = vmatpush.msra.mxu0 %v1180
      %1192 = vmatpush.msra.mxu0 %v1179
      %1193 = vmatpush.msra.mxu0 %v1178
      %1194 = vmatpush.msra.mxu0 %v1177
      %1195 = vmatpush.msra.mxu0 %v1176
      %1196 = vmatpush.msra.mxu0 %v1175
      %1197 = vmatpush.msra.mxu0 %v1174
      %1198 = vmatpush.msra.mxu0 %v1173
      %1199 = vmatpush.msra.mxu0 %v1172
      %1200 = vmatpush.msra.mxu0 %v1171
      %1201 = vmatpush.msra.mxu0 %v1170
      %1202 = vmatpush.msra.mxu0 %v1169
      %1203 = vmatpush.msra.mxu0 %v1168
      %1204 = vmatmul.f32.gmra.mxu0 %v1136
      %v1205 = vpop.f32.mrf.mxu0
      %v1206 = vadd.f32 %v1186, %v1205
      %1207 = vmatmul.f32.gmra.mxu0 %v1137
      %v1208 = vpop.f32.mrf.mxu0
      %v1209 = vadd.f32 %v1186, %v1208
      %1210 = vmatmul.f32.gmra.mxu0 %v1138
      %v1211 = vpop.f32.mrf.mxu0
      %v1212 = vadd.f32 %v1186, %v1211
      %1213 = vmatmul.f32.gmra.mxu0 %v1139
      %v1214 = vpop.f32.mrf.mxu0
      %v1215 = vadd.f32 %v1186, %v1214
      %1216 = vmatmul.f32.gmra.mxu0 %v1140
      %v1217 = vpop.f32.mrf.mxu0
      %v1218 = vadd.f32 %v1186, %v1217
      %1219 = vmatmul.f32.gmra.mxu0 %v1141
      %v1220 = vpop.f32.mrf.mxu0
      %v1221 = vadd.f32 %v1186, %v1220
      %1222 = vmatmul.f32.gmra.mxu0 %v1142
      %v1223 = vpop.f32.mrf.mxu0
      %v1224 = vadd.f32 %v1186, %v1223
      %1225 = vmatmul.f32.gmra.mxu0 %v1143
      %v1226 = vpop.f32.mrf.mxu0
      %v1227 = vadd.f32 %v1186, %v1226
      %1228 = vmatmul.f32.gmra.mxu0 %v1144
      %v1229 = vpop.f32.mrf.mxu0
      %v1230 = vadd.f32 %v1186, %v1229
      %1231 = vmatmul.f32.gmra.mxu0 %v1145
      %v1232 = vpop.f32.mrf.mxu0
      %v1233 = vadd.f32 %v1186, %v1232
      %1234 = vmatmul.f32.gmra.mxu0 %v1146
      %v1235 = vpop.f32.mrf.mxu0
      %v1236 = vadd.f32 %v1186, %v1235
      %1237 = vmatmul.f32.gmra.mxu0 %v1147
      %v1238 = vpop.f32.mrf.mxu0
      %v1239 = vadd.f32 %v1186, %v1238
      %1240 = vmatmul.f32.gmra.mxu0 %v1148
      %v1241 = vpop.f32.mrf.mxu0
      %v1242 = vadd.f32 %v1186, %v1241
      %1243 = vmatmul.f32.gmra.mxu0 %v1149
      %v1244 = vpop.f32.mrf.mxu0
      %v1245 = vadd.f32 %v1186, %v1244
      %1246 = vmatmul.f32.gmra.mxu0 %v1150
      %v1247 = vpop.f32.mrf.mxu0
      %v1248 = vadd.f32 %v1186, %v1247
      %1249 = vmatmul.f32.gmra.mxu0 %v1151
      %v1250 = vpop.f32.mrf.mxu0
      %v1251 = vadd.f32 %v1186, %v1250
      %1252 = vmatmul.f32.gmra.mxu0 %v1152
      %v1253 = vpop.f32.mrf.mxu0
      %v1254 = vadd.f32 %v1186, %v1253
      %1255 = vmatmul.f32.gmra.mxu0 %v1153
      %v1256 = vpop.f32.mrf.mxu0
      %v1257 = vadd.f32 %v1186, %v1256
      %1258 = vmatmul.f32.gmra.mxu0 %v1154
      %v1259 = vpop.f32.mrf.mxu0
      %v1260 = vadd.f32 %v1186, %v1259
      %1261 = vmatmul.f32.gmra.mxu0 %v1155
      %v1262 = vpop.f32.mrf.mxu0
      %v1263 = vadd.f32 %v1186, %v1262
      %1264 = vmatmul.f32.gmra.mxu0 %v1156
      %v1265 = vpop.f32.mrf.mxu0
      %v1266 = vadd.f32 %v1186, %v1265
      %1267 = vmatmul.f32.gmra.mxu0 %v1157
      %v1268 = vpop.f32.mrf.mxu0
      %v1269 = vadd.f32 %v1186, %v1268
      %1270 = vmatmul.f32.gmra.mxu0 %v1158
      %v1271 = vpop.f32.mrf.mxu0
      %v1272 = vadd.f32 %v1186, %v1271
      %1273 = vmatmul.f32.gmra.mxu0 %v1159
      %v1274 = vpop.f32.mrf.mxu0
      %v1275 = vadd.f32 %v1186, %v1274
      %1276 = vmatmul.f32.gmra.mxu0 %v1160
      %v1277 = vpop.f32.mrf.mxu0
      %v1278 = vadd.f32 %v1186, %v1277
      %1279 = vmatmul.f32.gmra.mxu0 %v1161
      %v1280 = vpop.f32.mrf.mxu0
      %v1281 = vadd.f32 %v1186, %v1280
      %1282 = vmatmul.f32.gmra.mxu0 %v1162
      %v1283 = vpop.f32.mrf.mxu0
      %v1284 = vadd.f32 %v1186, %v1283
      %1285 = vmatmul.f32.gmra.mxu0 %v1163
      %v1286 = vpop.f32.mrf.mxu0
      %v1287 = vadd.f32 %v1186, %v1286
      %1288 = vmatmul.f32.gmra.mxu0 %v1164
      %v1289 = vpop.f32.mrf.mxu0
      %v1290 = vadd.f32 %v1186, %v1289
      %1291 = vmatmul.f32.gmra.mxu0 %v1165
      %v1292 = vpop.f32.mrf.mxu0
      %v1293 = vadd.f32 %v1186, %v1292
      %1294 = vmatmul.f32.gmra.mxu0 %v1166
      %v1295 = vpop.f32.mrf.mxu0
      %v1296 = vadd.f32 %v1186, %v1295
      %1297 = vmatmul.f32.gmra.mxu0 %v1167
      %v1298 = vpop.f32.mrf.mxu0
      %v1299 = vadd.f32 %v1186, %v1298
      %1300 = vdwg.mxu0
      %vm1301 = vcmask 15360
      %1302 = vst.msk [vmem:[%s388] sm:$0xff] %vm1301, %v1206
      %1303 = vst.msk [vmem:[%s388 + $0x8] sm:$0xff] %vm1301, %v1209
      %1304 = vst.msk [vmem:[%s388 + $0x10] sm:$0xff] %vm1301, %v1212
      %1305 = vst.msk [vmem:[%s388 + $0x18] sm:$0xff] %vm1301, %v1215
      %1306 = vst.msk [vmem:[%s388 + $0x20] sm:$0xff] %vm1301, %v1218
      %1307 = vst.msk [vmem:[%s388 + $0x28] sm:$0xff] %vm1301, %v1221
      %1308 = vst.msk [vmem:[%s388 + $0x30] sm:$0xff] %vm1301, %v1224
      %1309 = vst.msk [vmem:[%s388 + $0x38] sm:$0xff] %vm1301, %v1227
      %1310 = vst.msk [vmem:[%s388 + $0x40] sm:$0xff] %vm1301, %v1230
      %1311 = vst.msk [vmem:[%s388 + $0x48] sm:$0xff] %vm1301, %v1233
      %1312 = vst.msk [vmem:[%s388 + $0x50] sm:$0xff] %vm1301, %v1236
      %1313 = vst.msk [vmem:[%s388 + $0x58] sm:$0xff] %vm1301, %v1239
      %1314 = vst.msk [vmem:[%s388 + $0x60] sm:$0xff] %vm1301, %v1242
      %1315 = vst.msk [vmem:[%s388 + $0x68] sm:$0xff] %vm1301, %v1245
      %1316 = vst.msk [vmem:[%s388 + $0x70] sm:$0xff] %vm1301, %v1248
      %1317 = vst.msk [vmem:[%s388 + $0x78] sm:$0xff] %vm1301, %v1251
      %1318 = vst.msk [vmem:[%s388 + $0x80] sm:$0xff] %vm1301, %v1254
      %1319 = vst.msk [vmem:[%s388 + $0x88] sm:$0xff] %vm1301, %v1257
      %1320 = vst.msk [vmem:[%s388 + $0x90] sm:$0xff] %vm1301, %v1260
      %1321 = vst.msk [vmem:[%s388 + $0x98] sm:$0xff] %vm1301, %v1263
      %1322 = vst.msk [vmem:[%s388 + $0xa0] sm:$0xff] %vm1301, %v1266
      %1323 = vst.msk [vmem:[%s388 + $0xa8] sm:$0xff] %vm1301, %v1269
      %1324 = vst.msk [vmem:[%s388 + $0xb0] sm:$0xff] %vm1301, %v1272
      %1325 = vst.msk [vmem:[%s388 + $0xb8] sm:$0xff] %vm1301, %v1275
      %1326 = vst.msk [vmem:[%s388 + $0xc0] sm:$0xff] %vm1301, %v1278
      %1327 = vst.msk [vmem:[%s388 + $0xc8] sm:$0xff] %vm1301, %v1281
      %1328 = vst.msk [vmem:[%s388 + $0xd0] sm:$0xff] %vm1301, %v1284
      %1329 = vst.msk [vmem:[%s388 + $0xd8] sm:$0xff] %vm1301, %v1287
      %1330 = vst.msk [vmem:[%s388 + $0xe0] sm:$0xff] %vm1301, %v1290
      %1331 = vst.msk [vmem:[%s388 + $0xe8] sm:$0xff] %vm1301, %v1293
      %1332 = vst.msk [vmem:[%s388 + $0xf0] sm:$0xff] %vm1301, %v1296
      %1333 = vst.msk [vmem:[%s388 + $0xf8] sm:$0xff] %vm1301, %v1299
      %s1334 = smul.u32 32, %s22
      %p1335 = scmp.lt.s32.totalorder %s1334, 63
      %s1336 = scalar_select %p1335, %s1334, 63
      %s1337 = smul.addr %s1336, 8
      %s1338 = scalar_lea.vmem %s11, %s1337
      // Predicated region
      $region65: #{pinn_forward.1} parent=63 // pred_check
        %p1339 = pneg %p276
      $region66: #{pinn_forward.1} parent=63 // pred_check_branch
        %1341 = sbr.rel (%p1339) target = $region68
      $region67: #{pinn_forward.1} parent=63 // pred_region
        %s1342 = smul.u32 32, %s22
      $region68: #{pinn_forward.1} parent=63 // pred_fallthru
        _
    $region64: #{pinn_forward.1} parent=5 // pred_fallthru
      _
    %p1343 = scmp.le.s32.totalorder 2, %s17
    // Predicated region
    $region69: #{pinn_forward.1} parent=5 // pred_check
      %p1344 = pneg %p1343
    $region70: #{pinn_forward.1} parent=5 // pred_check_branch
      %1346 = sbr.rel (%p1344) target = $region72
    $region71: #{pinn_forward.1} parent=5 // pred_region
      %s1347 = ssub.s32 %s17, 2
      // Predicated region
      $region73: #{pinn_forward.1} parent=71 // pred_check
        %p1348 = pneg %p282
      $region74: #{pinn_forward.1} parent=71 // pred_check_branch
        %1350 = sbr.rel (%p1348) target = $region76
      $region75: #{pinn_forward.1} parent=71 // pred_region
        %s1351 = smul.u32 32, %s23
        %p1352 = scmp.lt.s32.totalorder %s1351, 63
        %s1353 = scalar_select %p1352, %s1351, 63
        %s1354 = smul.addr %s1353, 8
        %s1355 = scalar_lea.vmem %s11, %s1354
      $region76: #{pinn_forward.1} parent=71 // pred_fallthru
        _
    $region72: #{pinn_forward.1} parent=5 // pred_fallthru
      _
  $region6: #{pinn_forward.1} parent=0 // loop_footer
    %s21 = sadd.s32 1, %s17
  $region7: #{pinn_forward.1} parent=0 // loop_footer_branch
    %16 = sbr.rel target = $region3
  $region8: #{pinn_forward.1} parent=0 // loop_exit
    _

</llo_original>
